<compile_context>
chip_gen: v6e
topology: v6e:2x2x1
jax: 0.10.0
libtpu: 0.0.40
codegen_flags: <defaults>
</compile_context>

<pallas_src>
import jax
import jax.numpy as jnp
from jax.experimental import pallas as pl
from jax.experimental.pallas import tpu as pltpu


def _round_up(x, m):
    return ((x + m - 1) // m) * m


def _cdiv(a, b):
    return (a + b - 1) // b


def nbeats_fused_kernel(x_ref, wb_ref, bb_ref, wf_ref, bf_ref,
                        back_ref, fore_ref):
    # x_ref:    (TB, input_size)
    # wb_ref:   (input_size, input_size)   fused backcast weights (resident)
    # bb_ref:   (1, input_size)            fused backcast bias    (resident)
    # wf_ref:   (input_size, n_ahead)      fused forecast weights (resident)
    # bf_ref:   (1, n_ahead)               fused forecast bias    (resident)
    # back_ref: (TB, input_size)
    # fore_ref: (TB, n_ahead)
    x = x_ref[...]
    back = jnp.dot(x, wb_ref[...], preferred_element_type=jnp.float32)
    back_ref[...] = (back + bb_ref[...].astype(jnp.float32)).astype(back_ref.dtype)
    fore = jnp.dot(x, wf_ref[...], preferred_element_type=jnp.float32)
    fore_ref[...] = (fore + bf_ref[...].astype(jnp.float32)).astype(fore_ref.dtype)


def _resident_spec(block_shape):
    """BlockSpec for an array whose block index is constant over the grid."""
    try:
        return pl.BlockSpec(block_shape, lambda i: (0, 0),
                            pipeline_mode=pl.Buffered(1))
    except TypeError:  # older BlockSpec signature without pipeline_mode
        return pl.BlockSpec(block_shape, lambda i: (0, 0))


def nbeats_trend_forward(x, W, b, backcast_basis, forecast_basis):
    B, input_size = x.shape
    n_ahead = forecast_basis.shape[0]
    dtype = x.dtype
    itemsize = jnp.dtype(dtype).itemsize
    f32 = jnp.float32

    # ---- Wrapper-side algebraic fusion of the (degree+1) contraction (f32) ----
    W_back = (W.astype(f32).T @ backcast_basis.astype(f32).T).astype(dtype)     # (in, in)
    b_back = (b.astype(f32) @ backcast_basis.astype(f32).T).astype(dtype)       # (in,)
    W_fore = (W.astype(f32).T @ forecast_basis.astype(f32).T).astype(dtype)     # (in, na)
    b_fore = (b.astype(f32) @ forecast_basis.astype(f32).T).astype(dtype)       # (na,)
    b_back = b_back.reshape(1, input_size)
    b_fore = b_fore.reshape(1, n_ahead)

    # ---- Batch tile sizing from a VMEM budget ----
    # Streamed (double-buffered) per-row bytes: x tile + both output tiles.
    SCOPED_BUDGET = 12 << 20  # fits v5e's 16 MiB scoped default with headroom
    weight_bytes = (input_size * input_size + input_size * n_ahead
                    + input_size + n_ahead) * itemsize          # single-buffered
    row_bytes = 2 * (2 * input_size + n_ahead) * itemsize
    TB_budget = max(8, ((SCOPED_BUDGET - weight_bytes) // row_bytes) // 8 * 8)
    TB_budget = min(TB_budget, 32768)

    # Number of grid steps: avoid pathological padding, keep >=2 steps for
    # megacore (v7x) when the batch is large enough to split.
    n_steps = max(_cdiv(B, TB_budget), 1)
    if B >= 16 and n_steps < 2:
        n_steps = 2
    TB = _round_up(_cdiv(B, n_steps), 8)
    n_steps = _cdiv(B, TB)
    B_pad = TB * n_steps

    x_pad = x if B_pad == B else jnp.pad(x, ((0, B_pad - B), (0, 0)))

    vmem_bytes = weight_bytes + TB * row_bytes
    vmem_limit = int(min(max(2 * vmem_bytes, 4 << 20), 48 << 20))  # never the full 64 MiB

    cost = pl.CostEstimate(
        flops=2 * B_pad * input_size * (input_size + n_ahead),
        transcendentals=0,
        bytes_accessed=(B_pad * input_size                       # x (incl. padded rows)
                        + B_pad * (input_size + n_ahead)         # outputs
                        + input_size * (input_size + n_ahead)    # fused weights
                        + (input_size + n_ahead)) * itemsize,    # fused biases
    )

    back_out, fore_out = pl.pallas_call(
        nbeats_fused_kernel,
        out_shape=(jax.ShapeDtypeStruct((B_pad, input_size), dtype),
                   jax.ShapeDtypeStruct((B_pad, n_ahead), dtype)),
        grid=(n_steps,),
        in_specs=[
            pl.BlockSpec((TB, input_size), lambda i: (i, 0)),     # x tile (streamed)
            _resident_spec((input_size, input_size)),             # W_back
            _resident_spec((1, input_size)),                      # b_back
            _resident_spec((input_size, n_ahead)),                # W_fore
            _resident_spec((1, n_ahead)),                         # b_fore
        ],
        out_specs=(pl.BlockSpec((TB, input_size), lambda i: (i, 0)),
                   pl.BlockSpec((TB, n_ahead), lambda i: (i, 0))),
        compiler_params=pltpu.CompilerParams(
            dimension_semantics=("parallel",),
            vmem_limit_bytes=vmem_limit,
        ),
        cost_estimate=cost,
    )(x_pad, W_back, b_back, W_fore, b_fore)

    # Glue: drop padded rows, unsqueeze(2) on the forecast.
    backcast = back_out[:B]
    forecast = fore_out[:B][:, :, None]
    return backcast, forecast


def make_params(key, input_size, n_ahead, degree, dtype=jnp.float32):
    """Deterministic parameter init mimicking nn.Linear's default init."""
    kW, kb = jax.random.split(key)
    bound = 1.0 / jnp.sqrt(float(input_size))
    W = jax.random.uniform(kW, (degree + 1, input_size), dtype,
                           minval=-bound, maxval=bound)
    b = jax.random.uniform(kb, (degree + 1,), dtype,
                           minval=-bound, maxval=bound)

    backcast_time = jnp.linspace(0.0, 1.0, input_size, dtype=dtype)[:, None]
    forecast_time = jnp.linspace(0.0, 1.0, n_ahead, dtype=dtype)[:, None]
    backcast_basis = jnp.concatenate(
        [backcast_time ** i for i in range(degree + 1)], axis=1)  # (input_size, degree+1)
    forecast_basis = jnp.concatenate(
        [forecast_time ** i for i in range(degree + 1)], axis=1)  # (n_ahead, degree+1)
    return W, b, backcast_basis, forecast_basis


def reference_forward(x, W, b, backcast_basis, forecast_basis):
    theta = x @ W.T + b
    backcast = theta @ backcast_basis.T
    forecast = theta @ forecast_basis.T
    return backcast, forecast[:, :, None]


if __name__ == "__main__":
    batch = 2
    input_size = 16
    n_ahead = 8
    degree = 3

    key = jax.random.PRNGKey(0)
    kx, kp = jax.random.split(key)
    x = jax.random.normal(kx, (batch, input_size), dtype=jnp.float32)
    W, b, backcast_basis, forecast_basis = make_params(
        kp, input_size, n_ahead, degree)

    backcast, forecast = nbeats_trend_forward(
        x, W, b, backcast_basis, forecast_basis)
    jax.block_until_ready((backcast, forecast))

    # Correctness check against pure-JAX reference (fusion changes FP summation
    # order slightly; stays within tolerance).
    ref_back, ref_fore = reference_forward(
        x, W, b, backcast_basis, forecast_basis)
    assert backcast.shape == (batch, input_size)
    assert forecast.shape == (batch, n_ahead, 1)
    assert jnp.allclose(backcast, ref_back, atol=1e-5, rtol=1e-5)
    assert jnp.allclose(forecast, ref_fore, atol=1e-5, rtol=1e-5)

    print("KERNEL_OK")
</pallas_src>

<mosaic_0001>
module attributes {stable_mosaic.version = 11 : i64} {
  func.func @nbeats_fused_kernel(%arg0: i32, %arg1: memref<8x16xf32, #tpu.memory_space<vmem>>, %arg2: memref<16x16xf32, #tpu.memory_space<vmem>>, %arg3: memref<1x16xf32, #tpu.memory_space<vmem>>, %arg4: memref<16x8xf32, #tpu.memory_space<vmem>>, %arg5: memref<1x8xf32, #tpu.memory_space<vmem>>, %arg6: memref<8x16xf32, #tpu.memory_space<vmem>>, %arg7: memref<8x8xf32, #tpu.memory_space<vmem>>) attributes {dimension_semantics = [#tpu.dimension_semantics<parallel>], iteration_bounds = array<i64: 1>, scalar_prefetch = 0 : i64, scratch_operands = 0 : i64, tpu.core_type = #tpu.core_type<tc>, window_params = [{transform_indices = @transform_0, window_bounds = array<i64: 8, 16>}, {pipeline_mode = #tpu.pipeline_mode<synchronous>, transform_indices = @transform_1, window_bounds = array<i64: 16, 16>}, {pipeline_mode = #tpu.pipeline_mode<synchronous>, transform_indices = @transform_2, window_bounds = array<i64: 1, 16>}, {pipeline_mode = #tpu.pipeline_mode<synchronous>, transform_indices = @transform_3, window_bounds = array<i64: 16, 8>}, {pipeline_mode = #tpu.pipeline_mode<synchronous>, transform_indices = @transform_4, window_bounds = array<i64: 1, 8>}, {transform_indices = @transform_5, window_bounds = array<i64: 8, 16>}, {transform_indices = @transform_6, window_bounds = array<i64: 8, 8>}]} {
    %c0 = arith.constant 0 : index
    %c0_0 = arith.constant 0 : index
    %0 = vector.load %arg1[%c0, %c0_0] : memref<8x16xf32, #tpu.memory_space<vmem>>, vector<8x16xf32>
    %c0_1 = arith.constant 0 : index
    %c0_2 = arith.constant 0 : index
    %1 = vector.load %arg2[%c0_1, %c0_2] : memref<16x16xf32, #tpu.memory_space<vmem>>, vector<16x16xf32>
    %cst = arith.constant dense<0.000000e+00> : vector<8x16xf32>
    %2 = tpu.matmul %0, %1, %cst {dimension_numbers = #tpu.dot_dimension_numbers<[1], [0], [0], [1], [0, 0, 1, 1], [], []>} : vector<8x16xf32>, vector<16x16xf32>, vector<8x16xf32> -> vector<8x16xf32>
    %c0_3 = arith.constant 0 : index
    %c0_4 = arith.constant 0 : index
    %3 = vector.load %arg3[%c0_3, %c0_4] : memref<1x16xf32, #tpu.memory_space<vmem>>, vector<1x16xf32>
    %4 = vector.broadcast %3 : vector<1x16xf32> to vector<8x16xf32>
    %5 = arith.addf %2, %4 : vector<8x16xf32>
    %c0_5 = arith.constant 0 : index
    %c0_6 = arith.constant 0 : index
    %6 = vector.load %arg6[%c0_5, %c0_6] : memref<8x16xf32, #tpu.memory_space<vmem>>, vector<8x16xf32>
    tpu.vector_store %arg6[%c0_5, %c0_6], %5 {strides = array<i32>} : memref<8x16xf32, #tpu.memory_space<vmem>>, vector<8x16xf32>,
    %c0_7 = arith.constant 0 : index
    %c0_8 = arith.constant 0 : index
    %7 = vector.load %arg4[%c0_7, %c0_8] : memref<16x8xf32, #tpu.memory_space<vmem>>, vector<16x8xf32>
    %cst_9 = arith.constant dense<0.000000e+00> : vector<8x8xf32>
    %8 = tpu.matmul %0, %7, %cst_9 {dimension_numbers = #tpu.dot_dimension_numbers<[1], [0], [0], [1], [0, 0, 1, 1], [], []>} : vector<8x16xf32>, vector<16x8xf32>, vector<8x8xf32> -> vector<8x8xf32>
    %c0_10 = arith.constant 0 : index
    %c0_11 = arith.constant 0 : index
    %9 = vector.load %arg5[%c0_10, %c0_11] : memref<1x8xf32, #tpu.memory_space<vmem>>, vector<1x8xf32>
    %10 = vector.broadcast %9 : vector<1x8xf32> to vector<8x8xf32>
    %11 = arith.addf %8, %10 : vector<8x8xf32>
    %c0_12 = arith.constant 0 : index
    %c0_13 = arith.constant 0 : index
    %12 = vector.load %arg7[%c0_12, %c0_13] : memref<8x8xf32, #tpu.memory_space<vmem>>, vector<8x8xf32>
    tpu.vector_store %arg7[%c0_12, %c0_13], %11 {strides = array<i32>} : memref<8x8xf32, #tpu.memory_space<vmem>>, vector<8x8xf32>,
    return
  }
  func.func @transform_0(%arg0: i32) -> (i32, i32) {
    %c0_i32 = arith.constant 0 : i32
    %c0_i32_0 = arith.constant 0 : i32
    return %arg0, %c0_i32 : i32, i32
  }
  func.func @transform_1(%arg0: i32) -> (i32, i32) {
    %c0_i32 = arith.constant 0 : i32
    %c0_i32_0 = arith.constant 0 : i32
    %c0_i32_1 = arith.constant 0 : i32
    return %c0_i32, %c0_i32_0 : i32, i32
  }
  func.func @transform_2(%arg0: i32) -> (i32, i32) {
    %c0_i32 = arith.constant 0 : i32
    %c0_i32_0 = arith.constant 0 : i32
    %c0_i32_1 = arith.constant 0 : i32
    return %c0_i32, %c0_i32_0 : i32, i32
  }
  func.func @transform_3(%arg0: i32) -> (i32, i32) {
    %c0_i32 = arith.constant 0 : i32
    %c0_i32_0 = arith.constant 0 : i32
    %c0_i32_1 = arith.constant 0 : i32
    return %c0_i32, %c0_i32_0 : i32, i32
  }
  func.func @transform_4(%arg0: i32) -> (i32, i32) {
    %c0_i32 = arith.constant 0 : i32
    %c0_i32_0 = arith.constant 0 : i32
    %c0_i32_1 = arith.constant 0 : i32
    return %c0_i32, %c0_i32_0 : i32, i32
  }
  func.func @transform_5(%arg0: i32) -> (i32, i32) {
    %c0_i32 = arith.constant 0 : i32
    %c0_i32_0 = arith.constant 0 : i32
    return %arg0, %c0_i32 : i32, i32
  }
  func.func @transform_6(%arg0: i32) -> (i32, i32) {
    %c0_i32 = arith.constant 0 : i32
    %c0_i32_0 = arith.constant 0 : i32
    return %arg0, %c0_i32 : i32, i32
  }
}

</mosaic_0001>

<llo_original>
// kernel: tpu_custom_call.1
$region0: #{tpu_custom_call.1}
  #allocation0 [shape = 'u32[]', space=smem, size = 0x4, offset = 0x4, fixed_abs, tag = 'smem constant byte address 0x4 - core index']
  #allocation1 [shape = 'u32[144,128]{1,0:T(1,128)}', space=vmem, size = 0x12000, scoped, tag = 'internal scratch']
  %s0 = inlined_call_operand.vmem [shape: f32[8,16], index: 0, kind: input, shape index: {}]
  %s1 = inlined_call_operand.vmem [shape: f32[16,16], index: 1, kind: input, shape index: {}]
  %s2 = inlined_call_operand.vmem [shape: f32[1,16], index: 2, kind: input, shape index: {}]
  %s3 = inlined_call_operand.vmem [shape: f32[16,8], index: 3, kind: input, shape index: {}]
  %s4 = inlined_call_operand.vmem [shape: f32[1,8], index: 4, kind: input, shape index: {}]
  %s5 = inlined_call_operand.hbm [shape: f32[8,16], index: 5, kind: output, shape index: {0}]
  %s6 = inlined_call_operand.hbm [shape: f32[8,8], index: 6, kind: output, shape index: {1}]
  %7 = xla_tuple %s5, %s6
  %s8 = sld [smem:[#allocation0]]
  $region38: #{tpu_custom_call.1} parent=0
    _
  %s10 = ssub.s32 1, %s8
  %s11 = scalar_select 0, %s10, %s8
  $region1: #{tpu_custom_call.1} parent=0
    #allocation2 [shape = 'u8[4096]{0}', space=vmem, size = 0x1000, scoped, tag = 'output window, operand 0, single buffered']
    #allocation3 [shape = 's32[1]{0}', space=sflag, size = 0x4, scoped, tag = 'scoped memory for tpu_custom_call.1']
    #allocation4 [shape = 'u8[4096]{0}', space=vmem, size = 0x1000, scoped, tag = 'output window, operand 1, single buffered']
    #allocation5 [shape = 's32[1]{0}', space=sflag, size = 0x4, scoped, tag = 'scoped memory for tpu_custom_call.1']
    %12 = vsyncpa [#allocation3], 0
    %13 = vsyncpa [#allocation5], 0
    // Predicated region
    $region2: #{tpu_custom_call.1} parent=1 // pred_check
      _
    $region3: #{tpu_custom_call.1} parent=1 // pred_check_branch
      %15 = sbr.rel (0) target = $region5
    $region4: #{tpu_custom_call.1} parent=1 // pred_region
      _
    $region5: #{tpu_custom_call.1} parent=1 // pred_fallthru
      _
    // Predicated region
    $region6: #{tpu_custom_call.1} parent=1 // pred_check
      _
    $region7: #{tpu_custom_call.1} parent=1 // pred_check_branch
      %17 = sbr.rel (0) target = $region9
    $region8: #{tpu_custom_call.1} parent=1 // pred_region
      _
    $region9: #{tpu_custom_call.1} parent=1 // pred_fallthru
      _
    // Predicated region
    $region10: #{tpu_custom_call.1} parent=1 // pred_check
      _
    $region11: #{tpu_custom_call.1} parent=1 // pred_check_branch
      %19 = sbr.rel (0) target = $region13
    $region12: #{tpu_custom_call.1} parent=1 // pred_region
      _
    $region13: #{tpu_custom_call.1} parent=1 // pred_fallthru
      _
    // Predicated region
    $region14: #{tpu_custom_call.1} parent=1 // pred_check
      _
    $region15: #{tpu_custom_call.1} parent=1 // pred_check_branch
      %21 = sbr.rel (0) target = $region17
    $region16: #{tpu_custom_call.1} parent=1 // pred_region
      _
    $region17: #{tpu_custom_call.1} parent=1 // pred_fallthru
      _
    // Predicated region
    $region18: #{tpu_custom_call.1} parent=1 // pred_check
      _
    $region19: #{tpu_custom_call.1} parent=1 // pred_check_branch
      %23 = sbr.rel (0) target = $region21
    $region20: #{tpu_custom_call.1} parent=1 // pred_region
      _
    $region21: #{tpu_custom_call.1} parent=1 // pred_fallthru
      _
    %v24 = vld [vmem:[%s0] sm:$0xff]
    %v25 = vld [vmem:[%s1] sm:$0xff]
    %v26 = vld [vmem:[%s1 + $0x8] sm:$0xff]
    %v27 = vld [vmem:[%s2] sm:$0x1]
    %v29 = vlaneseq
    %v30 = vshrl.u32 %v29, 7
    %v31 = vsub.s32 0, %v30
    %v32 = vrot.slane %v27, %v31
    %vm34 = vcmask 130048
    %v36 = vsel %vm34, %v24, 0
    %38 = vmatprep.subr.mxu0 0.0
    %39 = vmatpush1.msra.mxu0 0.0
    %40 = vmatprep.subr.mxu0 0.0
    %41 = vmatpush1.msra.mxu0 0.0
    %42 = vmatprep.subr.mxu0 0.0
    %43 = vmatpush1.msra.mxu0 0.0
    %44 = vmatprep.subr.mxu0 0.0
    %45 = vmatpush1.msra.mxu0 0.0
    %46 = vmatprep.subr.mxu0 0.0
    %47 = vmatpush1.msra.mxu0 0.0
    %48 = vmatprep.subr.mxu0 0.0
    %49 = vmatpush1.msra.mxu0 0.0
    %50 = vmatprep.subr.mxu0 0.0
    %51 = vmatpush1.msra.mxu0 0.0
    %52 = vmatprep.subr.mxu0 0.0
    %53 = vmatpush1.msra.mxu0 0.0
    %54 = vmatprep.subr.mxu0 0.0
    %55 = vmatpush1.msra.mxu0 0.0
    %56 = vmatprep.subr.mxu0 0.0
    %57 = vmatpush1.msra.mxu0 0.0
    %58 = vmatprep.subr.mxu0 0.0
    %59 = vmatpush1.msra.mxu0 0.0
    %60 = vmatprep.subr.mxu0 0.0
    %61 = vmatpush1.msra.mxu0 0.0
    %62 = vmatprep.subr.mxu0 0.0
    %63 = vmatpush1.msra.mxu0 0.0
    %64 = vmatprep.subr.mxu0 0.0
    %65 = vmatpush1.msra.mxu0 0.0
    %66 = vmatprep.subr.mxu0 0.0
    %67 = vmatpush1.msra.mxu0 %v26
    %68 = vmatprep.subr.mxu0 0.0
    %69 = vmatpush1.msra.mxu0 %v25
    %70 = vmatprep.subr.mxu0 0.0
    %71 = vmatpush2.msra.mxu0 0.0
    %72 = vmatprep.subr.mxu0 0.0
    %73 = vmatpush2.msra.mxu0 0.0
    %74 = vmatprep.subr.mxu0 0.0
    %75 = vmatpush2.msra.mxu0 0.0
    %76 = vmatprep.subr.mxu0 0.0
    %77 = vmatpush2.msra.mxu0 0.0
    %78 = vmatprep.subr.mxu0 0.0
    %79 = vmatpush2.msra.mxu0 0.0
    %80 = vmatprep.subr.mxu0 0.0
    %81 = vmatpush2.msra.mxu0 0.0
    %82 = vmatprep.subr.mxu0 0.0
    %83 = vmatpush2.msra.mxu0 0.0
    %84 = vmatprep.subr.mxu0 0.0
    %85 = vmatpush2.msra.mxu0 0.0
    %86 = vmatprep.subr.mxu0 0.0
    %87 = vmatpush2.msra.mxu0 0.0
    %88 = vmatprep.subr.mxu0 0.0
    %89 = vmatpush2.msra.mxu0 0.0
    %90 = vmatprep.subr.mxu0 0.0
    %91 = vmatpush2.msra.mxu0 0.0
    %92 = vmatprep.subr.mxu0 0.0
    %93 = vmatpush2.msra.mxu0 0.0
    %94 = vmatprep.subr.mxu0 0.0
    %95 = vmatpush2.msra.mxu0 0.0
    %96 = vmatprep.subr.mxu0 0.0
    %97 = vmatpush2.msra.mxu0 0.0
    %98 = vmatprep.subr.mxu0 0.0
    %99 = vmatpush2.msra.mxu0 0.0
    %100 = vmatprep.subr.mxu0 0.0
    %101 = vmatpush2.msra.mxu0 0.0
    %102 = vmatprep.mubr.f32.mxu0 0.0
    %103 = vmatmul.mubr.f32.gmra.mxu0 %v36
    %v104 = vpop.f32.mrf.mxu0
    %v105 = vadd.f32 %v32, %v104
    %v106 = vpop.f32.mrf.mxu0
    %107 = vdwg.mxu0
    %108 = vst.msk [vmem:[#allocation2] sm:$0xff] %vm34, %v105
    %v109 = vld [vmem:[%s3] sm:$0xff]
    %v110 = vld [vmem:[%s3 + $0x8] sm:$0xff]
    %v111 = vld [vmem:[%s4] sm:$0x1]
    %v113 = vlaneseq
    %v114 = vshrl.u32 %v113, 7
    %v115 = vsub.s32 0, %v114
    %v116 = vrot.slane %v111, %v115
    %118 = vmatprep.subr.mxu0 0.0
    %119 = vmatpush1.msra.mxu0 0.0
    %120 = vmatprep.subr.mxu0 0.0
    %121 = vmatpush1.msra.mxu0 0.0
    %122 = vmatprep.subr.mxu0 0.0
    %123 = vmatpush1.msra.mxu0 0.0
    %124 = vmatprep.subr.mxu0 0.0
    %125 = vmatpush1.msra.mxu0 0.0
    %126 = vmatprep.subr.mxu0 0.0
    %127 = vmatpush1.msra.mxu0 0.0
    %128 = vmatprep.subr.mxu0 0.0
    %129 = vmatpush1.msra.mxu0 0.0
    %130 = vmatprep.subr.mxu0 0.0
    %131 = vmatpush1.msra.mxu0 0.0
    %132 = vmatprep.subr.mxu0 0.0
    %133 = vmatpush1.msra.mxu0 0.0
    %134 = vmatprep.subr.mxu0 0.0
    %135 = vmatpush1.msra.mxu0 0.0
    %136 = vmatprep.subr.mxu0 0.0
    %137 = vmatpush1.msra.mxu0 0.0
    %138 = vmatprep.subr.mxu0 0.0
    %139 = vmatpush1.msra.mxu0 0.0
    %140 = vmatprep.subr.mxu0 0.0
    %141 = vmatpush1.msra.mxu0 0.0
    %142 = vmatprep.subr.mxu0 0.0
    %143 = vmatpush1.msra.mxu0 0.0
    %144 = vmatprep.subr.mxu0 0.0
    %145 = vmatpush1.msra.mxu0 0.0
    %146 = vmatprep.subr.mxu0 0.0
    %147 = vmatpush1.msra.mxu0 %v110
    %148 = vmatprep.subr.mxu0 0.0
    %149 = vmatpush1.msra.mxu0 %v109
    %150 = vmatprep.subr.mxu0 0.0
    %151 = vmatpush2.msra.mxu0 0.0
    %152 = vmatprep.subr.mxu0 0.0
    %153 = vmatpush2.msra.mxu0 0.0
    %154 = vmatprep.subr.mxu0 0.0
    %155 = vmatpush2.msra.mxu0 0.0
    %156 = vmatprep.subr.mxu0 0.0
    %157 = vmatpush2.msra.mxu0 0.0
    %158 = vmatprep.subr.mxu0 0.0
    %159 = vmatpush2.msra.mxu0 0.0
    %160 = vmatprep.subr.mxu0 0.0
    %161 = vmatpush2.msra.mxu0 0.0
    %162 = vmatprep.subr.mxu0 0.0
    %163 = vmatpush2.msra.mxu0 0.0
    %164 = vmatprep.subr.mxu0 0.0
    %165 = vmatpush2.msra.mxu0 0.0
    %166 = vmatprep.subr.mxu0 0.0
    %167 = vmatpush2.msra.mxu0 0.0
    %168 = vmatprep.subr.mxu0 0.0
    %169 = vmatpush2.msra.mxu0 0.0
    %170 = vmatprep.subr.mxu0 0.0
    %171 = vmatpush2.msra.mxu0 0.0
    %172 = vmatprep.subr.mxu0 0.0
    %173 = vmatpush2.msra.mxu0 0.0
    %174 = vmatprep.subr.mxu0 0.0
    %175 = vmatpush2.msra.mxu0 0.0
    %176 = vmatprep.subr.mxu0 0.0
    %177 = vmatpush2.msra.mxu0 0.0
    %178 = vmatprep.subr.mxu0 0.0
    %179 = vmatpush2.msra.mxu0 0.0
    %180 = vmatprep.subr.mxu0 0.0
    %181 = vmatpush2.msra.mxu0 0.0
    %182 = vmatprep.mubr.f32.mxu0 0.0
    %183 = vmatmul.mubr.f32.gmra.mxu0 %v36
    %v184 = vpop.f32.mrf.mxu0
    %v185 = vadd.f32 %v116, %v184
    %v186 = vpop.f32.mrf.mxu0
    %187 = vdwg.mxu0
    %vm188 = vcmask 64512
    %189 = vst.msk [vmem:[#allocation4] sm:$0xff] %vm188, %v185
    // Predicated region
    $region22: #{tpu_custom_call.1} parent=1 // pred_check
      _
    $region23: #{tpu_custom_call.1} parent=1 // pred_check_branch
      %191 = sbr.rel (0) target = $region25
    $region24: #{tpu_custom_call.1} parent=1 // pred_region
      %s193 = ssub.s32 128, 128
      %194 = vsyncadd [#allocation3], %s193
      %s196 = sshll.u32 [#allocation2], 4
      %s197 = int_to_ptr.vmem [resolvable:$true] %s196
      %199 = dma.vmem_to_hbm [thread:$0]  %s197, 128, %s5, [#allocation3]
    $region25: #{tpu_custom_call.1} parent=1 // pred_fallthru
      _
    // Predicated region
    $region26: #{tpu_custom_call.1} parent=1 // pred_check
      _
    $region27: #{tpu_custom_call.1} parent=1 // pred_check_branch
      %201 = sbr.rel (0) target = $region29
    $region28: #{tpu_custom_call.1} parent=1 // pred_region
      %s203 = ssub.s32 128, 128
      %204 = vsyncadd [#allocation5], %s203
      %s206 = sshll.u32 [#allocation4], 4
      %s207 = int_to_ptr.vmem [resolvable:$true] %s206
      %209 = dma.vmem_to_hbm [thread:$0]  %s207, 128, %s6, [#allocation5]
    $region29: #{tpu_custom_call.1} parent=1 // pred_fallthru
      _
    // Predicated region
    $region30: #{tpu_custom_call.1} parent=1 // pred_check
      _
    $region31: #{tpu_custom_call.1} parent=1 // pred_check_branch
      %211 = sbr.rel (0) target = $region33
    $region32: #{tpu_custom_call.1} parent=1 // pred_region
      %212 = dma.done [#allocation3], 128
    $region33: #{tpu_custom_call.1} parent=1 // pred_fallthru
      _
    // Predicated region
    $region34: #{tpu_custom_call.1} parent=1 // pred_check
      _
    $region35: #{tpu_custom_call.1} parent=1 // pred_check_branch
      %214 = sbr.rel (0) target = $region37
    $region36: #{tpu_custom_call.1} parent=1 // pred_region
      %215 = dma.done [#allocation5], 128
    $region37: #{tpu_custom_call.1} parent=1 // pred_fallthru
      _
    %216 = vsyncpa [#allocation3], 1
    %217 = vsyncpa [#allocation5], 1

</llo_original>
